<compile_context>
chip_gen: v6e
topology: v6e:2x2x1
jax: 0.10.0
libtpu: 0.0.40
codegen_flags: <defaults>
</compile_context>

<pallas_src>
import jax
import jax.numpy as jnp
from jax import lax
from jax.experimental import pallas as pl
from jax.experimental.pallas import tpu as pltpu  # noqa: F401  (TPU backend)


# ----------------------------------------------------------------------------
# Fused Pallas kernel (whole ProgressiveGenerator.forward in one invocation)
# ----------------------------------------------------------------------------
def _make_kernel(*, n_used, cur_block, do_fade, item_len, leaky_slope):
    """Polyphase fused forward.

    Activations are kept as lists of phase slabs, each (C, N*item_len), where
    phase r of stage i holds samples m with m % 2^i == r (per batch item).
    Upsample(x2) is phase duplication; the k=3 conv on the upsampled signal is
    two folded (Cout, 2Cin) contractions (even / odd output phases).
    """

    def kernel(*refs):
        x_ref = refs[0]
        o_ref = refs[-1]
        idx = 1
        stage_refs = []
        for _ in range(n_used):
            stage_refs.append((refs[idx], refs[idx + 1], refs[idx + 2]))
            idx += 3
        wo_last_ref, bo_last_ref = refs[idx], refs[idx + 1]
        idx += 2
        if do_fade:
            wo_prev_ref, bo_prev_ref = refs[idx], refs[idx + 1]
            idx += 2

        C, W = x_ref.shape                                   # W = N * item_len
        col = lax.broadcasted_iota(jnp.int32, (1, W), 1)
        pos = col % item_len                                 # per-item position
        is_first = pos == 0                                  # left zero-pad cols
        is_last = pos == (item_len - 1)                      # right zero-pad cols
        zcol = jnp.zeros((C, 1), jnp.float32)

        phases = [x_ref[...]]                                # stage-0 input: 1 phase
        tmp = None                                           # fade-path out-conv

        for i in range(n_used):
            w_even = stage_refs[i][0][...]                   # (C, 2C) = [W0 | W1+W2]
            w_odd = stage_refs[i][1][...]                    # (C, 2C) = [W0+W1 | W2]
            b = stage_refs[i][2][...]                        # (C, 1)
            P = len(phases)

            # v_{P-1}[t-1] and v_0[t+1]; the per-item boundary mask is both the
            # conv zero padding and the cross-batch-bleed guard (batch folded
            # into lanes, so the shift wraps into the neighbouring item there).
            prev_hi = jnp.where(
                is_first, 0.0,
                jnp.concatenate([zcol, phases[P - 1][:, :W - 1]], axis=1))
            next_lo = jnp.where(
                is_last, 0.0,
                jnp.concatenate([phases[0][:, 1:], zcol], axis=1))

            # One wide contraction per parity: all phases & batch items on lanes.
            rhs_e = jnp.concatenate(
                [jnp.concatenate([phases[s - 1] if s > 0 else prev_hi,
                                  phases[s]], axis=0)
                 for s in range(P)], axis=1)                 # (2C, P*W)
            rhs_o = jnp.concatenate(
                [jnp.concatenate([phases[s],
                                  phases[s + 1] if s < P - 1 else next_lo], axis=0)
                 for s in range(P)], axis=1)                 # (2C, P*W)

            he = jnp.dot(w_even, rhs_e, preferred_element_type=jnp.float32) + b
            ho = jnp.dot(w_odd, rhs_o, preferred_element_type=jnp.float32) + b
            he = jnp.where(he >= 0.0, he, leaky_slope * he)  # LeakyReLU(0.2)
            ho = jnp.where(ho >= 0.0, ho, leaky_slope * ho)

            new_phases = []
            for s in range(P):
                new_phases.append(he[:, s * W:(s + 1) * W])  # output phase 2s
                new_phases.append(ho[:, s * W:(s + 1) * W])  # output phase 2s+1

            if do_fade and i == cur_block - 1:
                # out_sequence of the second-to-last block, (1-alpha) pre-folded
                # into wo_prev/bo_prev on the host.  1x1 conv = VPU mult + reduce.
                wo_p = wo_prev_ref[...]
                bo_p = bo_prev_ref[...]
                tmp = [jnp.sum(ph * wo_p, axis=0, keepdims=True) + bo_p
                       for ph in new_phases]

            phases = new_phases

        # Last block's out_sequence (alpha pre-folded) + fade blend (upsample of
        # the fade tap is phase duplication: final phase r reads tmp[r // 2]).
        wo_l = wo_last_ref[...]
        bo_l = bo_last_ref[...]
        rows = []
        for r, ph in enumerate(phases):
            y = jnp.sum(ph * wo_l, axis=0, keepdims=True) + bo_l
            if tmp is not None:
                y = y + tmp[r // 2]
            rows.append(y)
        o_ref[...] = jnp.concatenate(rows, axis=0)           # (P_final, W) store

    return kernel


# ----------------------------------------------------------------------------
# Wrapper (mirrors ProgressiveGenerator.forward semantics, NCL in / NCL out)
# ----------------------------------------------------------------------------
def progressive_generator_forward(x_ncl, block_params, cur_block, alpha,
                                  *, leaky_slope=0.2):
    N, C, L0 = x_ncl.shape
    n_used = cur_block + 1
    do_fade = (float(alpha) < 1.0) and (cur_block >= 1)
    Pf = 2 ** n_used                                          # final phase count
    Lf = L0 * Pf
    W = N * L0

    # Layout plumbing (host/XLA side): channels on sublanes, batch*length on lanes.
    x2d = jnp.transpose(x_ncl, (1, 0, 2)).reshape(C, W).astype(jnp.float32)

    inputs = [x2d]
    for i in range(n_used):
        p = block_params[i]
        w = p["w_conv"].astype(jnp.float32)                   # (Cout, Cin, 3)
        w0, w1, w2 = w[:, :, 0], w[:, :, 1], w[:, :, 2]
        inputs += [
            jnp.concatenate([w0, w1 + w2], axis=1),           # even-phase folded taps
            jnp.concatenate([w0 + w1, w2], axis=1),           # odd-phase folded taps
            p["b_conv"].reshape(-1, 1).astype(jnp.float32),
        ]

    a_last = float(alpha) if do_fade else 1.0
    p_last = block_params[cur_block]
    inputs += [(a_last * p_last["w_out"].reshape(-1, 1)).astype(jnp.float32),
               (a_last * p_last["b_out"].reshape(1, 1)).astype(jnp.float32)]
    if do_fade:
        a_prev = 1.0 - float(alpha)
        p_prev = block_params[cur_block - 1]
        inputs += [(a_prev * p_prev["w_out"].reshape(-1, 1)).astype(jnp.float32),
                   (a_prev * p_prev["b_out"].reshape(1, 1)).astype(jnp.float32)]

    kernel = _make_kernel(n_used=n_used, cur_block=cur_block, do_fade=do_fade,
                          item_len=L0, leaky_slope=leaky_slope)

    macs = sum(2 * C * (2 * C) * ((2 ** i) * W) for i in range(n_used)) + C * Pf * W
    bytes_acc = 4 * (int(x2d.size) + sum(int(v.size) for v in inputs[1:]) + Pf * W)

    out2d = pl.pallas_call(
        kernel,
        out_shape=jax.ShapeDtypeStruct((Pf, W), jnp.float32),
        cost_estimate=pl.CostEstimate(flops=2 * macs, transcendentals=0,
                                      bytes_accessed=bytes_acc),
    )(*inputs)

    # Polyphase -> time interleave + NCL re-packing: pure layout plumbing done
    # by XLA outside the kernel (lane interleave is layout-hostile in Mosaic).
    return out2d.reshape(Pf, N, L0).transpose(1, 2, 0).reshape(N, 1, Lf)


class ProgressiveGeneratorPallas:
    """Mirrors eeggan ProgressiveGenerator: blocks / cur_block / alpha."""

    def __init__(self, block_params, cur_block=0, alpha=1.0):
        self.block_params = block_params
        self.cur_block = cur_block
        self.alpha = alpha

    def forward(self, x_ncl):
        return progressive_generator_forward(
            x_ncl, self.block_params, self.cur_block, self.alpha)

    __call__ = forward


# ----------------------------------------------------------------------------
# Pure-JAX reference (independent path: lax.conv + jnp.repeat, NCL layout)
# ----------------------------------------------------------------------------
def _conv1d_ref(x_ncl, w_oik, b, *, padding, leaky_slope=None):
    out = lax.conv_general_dilated(
        x_ncl, w_oik, window_strides=(1,), padding=[(padding, padding)],
        dimension_numbers=("NCW", "OIW", "NCW"))
    out = out + b.reshape(1, -1, 1)
    if leaky_slope is not None:
        out = jnp.where(out >= 0.0, out, leaky_slope * out)
    return out


def reference_forward(x_ncl, block_params, cur_block, alpha):
    h = x_ncl
    fade = False
    tmp = None
    for i in range(cur_block + 1):
        p = block_params[i]
        h = jnp.repeat(h, 2, axis=2)                          # Upsample x2 nearest
        h = _conv1d_ref(h, p["w_conv"], p["b_conv"], padding=1, leaky_slope=0.2)
        if alpha < 1.0 and i == cur_block - 1:
            tmp = _conv1d_ref(h, p["w_out"], p["b_out"], padding=0)
            fade = True
        if i == cur_block:
            h = _conv1d_ref(h, p["w_out"], p["b_out"], padding=0)
    if fade:
        tmp = jnp.repeat(tmp, 2, axis=2)
        h = alpha * h + (1.0 - alpha) * tmp
    return h


# ----------------------------------------------------------------------------
# Deterministic parameters + driver
# ----------------------------------------------------------------------------
def make_block_params(key, cin, cout):
    k1, k2, k3, k4 = jax.random.split(key, 4)
    return {
        # torch Conv1d weight layout (Cout, Cin, K)
        "w_conv": jax.random.normal(k1, (cout, cin, 3), jnp.float32) / jnp.sqrt(3.0 * cin),
        "b_conv": 0.01 * jax.random.normal(k2, (cout,), jnp.float32),
        "w_out": jax.random.normal(k3, (1, cout, 1), jnp.float32) / jnp.sqrt(1.0 * cout),
        "b_out": 0.01 * jax.random.normal(k4, (1,), jnp.float32),
    }


if __name__ == "__main__":
    key = jax.random.PRNGKey(0)
    kx, kb0, kb1 = jax.random.split(key, 3)

    N, C, L0 = 2, 8, 8                                  # latent in NCL layout
    x = jax.random.normal(kx, (N, C, L0), jnp.float32)

    block_params = [
        make_block_params(kb0, C, C),                   # stage 0: L 8 -> 16
        make_block_params(kb1, C, C),                   # stage 1: L 16 -> 32
    ]

    gen = ProgressiveGeneratorPallas(block_params, cur_block=1, alpha=0.7)
    fwd = jax.jit(gen.forward)
    out = jax.block_until_ready(fwd(x))                 # (2, 1, 32) NCL

    ref = reference_forward(x, block_params, cur_block=1, alpha=0.7)
    assert out.shape == ref.shape == (N, 1, 4 * L0), (out.shape, ref.shape)
    assert jnp.allclose(out, ref, atol=1e-4, rtol=1e-4), "Pallas output mismatch vs reference"

    print("KERNEL_OK")
</pallas_src>

<mosaic_0001>
module attributes {stable_mosaic.version = 11 : i64} {
  func.func @kernel(%arg0: memref<8x16xf32, #tpu.memory_space<vmem>>, %arg1: memref<8x16xf32, #tpu.memory_space<vmem>>, %arg2: memref<8x16xf32, #tpu.memory_space<vmem>>, %arg3: memref<8x1xf32, #tpu.memory_space<vmem>>, %arg4: memref<8x16xf32, #tpu.memory_space<vmem>>, %arg5: memref<8x16xf32, #tpu.memory_space<vmem>>, %arg6: memref<8x1xf32, #tpu.memory_space<vmem>>, %arg7: memref<8x1xf32, #tpu.memory_space<vmem>>, %arg8: memref<1x1xf32, #tpu.memory_space<vmem>>, %arg9: memref<8x1xf32, #tpu.memory_space<vmem>>, %arg10: memref<1x1xf32, #tpu.memory_space<vmem>>, %arg11: memref<4x16xf32, #tpu.memory_space<vmem>>) attributes {dimension_semantics = [], scalar_prefetch = 0 : i64, scratch_operands = 0 : i64, tpu.core_type = #tpu.core_type<tc>} {
    %0 = tpu.iota {dimensions = array<i32: 1>} : vector<1x16xi32>
    %c8_i32 = arith.constant 8 : i32
    %c0_i32 = arith.constant 0 : i32
    %1 = arith.cmpi eq, %c8_i32, %c0_i32 : i32
    %c1_i32 = arith.constant 1 : i32
    %2 = arith.select %1, %c1_i32, %c8_i32 : i32
    %3 = vector.broadcast %2 : i32 to vector<1x16xi32>
    %4 = arith.remsi %0, %3 : vector<1x16xi32>
    %c0_i32_0 = arith.constant 0 : i32
    %5 = vector.broadcast %c0_i32_0 : i32 to vector<1x16xi32>
    %6 = arith.cmpi ne, %4, %5 : vector<1x16xi32>
    %c0_i32_1 = arith.constant 0 : i32
    %7 = vector.broadcast %c0_i32_1 : i32 to vector<1x16xi32>
    %8 = arith.cmpi slt, %4, %7 : vector<1x16xi32>
    %c0_i32_2 = arith.constant 0 : i32
    %9 = arith.cmpi slt, %2, %c0_i32_2 : i32
    %10 = vector.broadcast %9 : i1 to vector<1x16xi1>
    %11 = vector.broadcast %10 : vector<1x16xi1> to vector<1x16xi1>
    %12 = arith.xori %8, %11 : vector<1x16xi1>
    %13 = arith.andi %12, %6 : vector<1x16xi1>
    %14 = vector.broadcast %2 : i32 to vector<1x16xi32>
    %15 = arith.addi %4, %14 : vector<1x16xi32>
    %16 = arith.select %13, %15, %4 : vector<1x16xi1>, vector<1x16xi32>
    %c0_i32_3 = arith.constant 0 : i32
    %17 = vector.broadcast %c0_i32_3 : i32 to vector<1x16xi32>
    %18 = arith.cmpi eq, %16, %17 : vector<1x16xi32>
    %c7_i32 = arith.constant 7 : i32
    %19 = vector.broadcast %c7_i32 : i32 to vector<1x16xi32>
    %20 = arith.cmpi eq, %16, %19 : vector<1x16xi32>
    %cst = arith.constant 0.000000e+00 : f32
    %21 = vector.broadcast %cst : f32 to vector<8x1xf32>
    %c0 = arith.constant 0 : index
    %c0_4 = arith.constant 0 : index
    %22 = vector.load %arg0[%c0, %c0_4] : memref<8x16xf32, #tpu.memory_space<vmem>>, vector<8x16xf32>
    %c0_5 = arith.constant 0 : index
    %c0_6 = arith.constant 0 : index
    %23 = vector.load %arg1[%c0_5, %c0_6] : memref<8x16xf32, #tpu.memory_space<vmem>>, vector<8x16xf32>
    %c0_7 = arith.constant 0 : index
    %c0_8 = arith.constant 0 : index
    %24 = vector.load %arg2[%c0_7, %c0_8] : memref<8x16xf32, #tpu.memory_space<vmem>>, vector<8x16xf32>
    %c0_9 = arith.constant 0 : index
    %c0_10 = arith.constant 0 : index
    %25 = vector.load %arg3[%c0_9, %c0_10] : memref<8x1xf32, #tpu.memory_space<vmem>>, vector<8x1xf32>
    %26 = vector.extract_strided_slice %22 {offsets = [0, 0], sizes = [8, 15], strides = [1, 1]} : vector<8x16xf32> to vector<8x15xf32>
    %27 = tpu.concatenate %21, %26 in 1 : vector<8x1xf32>, vector<8x15xf32> -> vector<8x16xf32>
    %cst_11 = arith.constant 0.000000e+00 : f32
    %28 = vector.shape_cast %18 : vector<1x16xi1> to vector<1x16xi1>
    %29 = vector.broadcast %28 : vector<1x16xi1> to vector<8x16xi1>
    %30 = vector.broadcast %cst_11 : f32 to vector<8x16xf32>
    %31 = arith.select %29, %30, %27 : vector<8x16xi1>, vector<8x16xf32>
    %32 = vector.extract_strided_slice %22 {offsets = [0, 1], sizes = [8, 15], strides = [1, 1]} : vector<8x16xf32> to vector<8x15xf32>
    %33 = tpu.concatenate %32, %21 in 1 : vector<8x15xf32>, vector<8x1xf32> -> vector<8x16xf32>
    %cst_12 = arith.constant 0.000000e+00 : f32
    %34 = vector.shape_cast %20 : vector<1x16xi1> to vector<1x16xi1>
    %35 = vector.broadcast %34 : vector<1x16xi1> to vector<8x16xi1>
    %36 = vector.broadcast %cst_12 : f32 to vector<8x16xf32>
    %37 = arith.select %35, %36, %33 : vector<8x16xi1>, vector<8x16xf32>
    %38 = tpu.concatenate %31, %22 in 0 : vector<8x16xf32>, vector<8x16xf32> -> vector<16x16xf32>
    %39 = tpu.concatenate %22, %37 in 0 : vector<8x16xf32>, vector<8x16xf32> -> vector<16x16xf32>
    %cst_13 = arith.constant dense<0.000000e+00> : vector<8x16xf32>
    %40 = tpu.matmul %23, %38, %cst_13 {dimension_numbers = #tpu.dot_dimension_numbers<[1], [0], [0], [1], [0, 0, 1, 1], [], []>} : vector<8x16xf32>, vector<16x16xf32>, vector<8x16xf32> -> vector<8x16xf32>
    %41 = vector.broadcast %25 : vector<8x1xf32> to vector<8x16xf32>
    %42 = arith.addf %40, %41 : vector<8x16xf32>
    %cst_14 = arith.constant dense<0.000000e+00> : vector<8x16xf32>
    %43 = tpu.matmul %24, %39, %cst_14 {dimension_numbers = #tpu.dot_dimension_numbers<[1], [0], [0], [1], [0, 0, 1, 1], [], []>} : vector<8x16xf32>, vector<16x16xf32>, vector<8x16xf32> -> vector<8x16xf32>
    %44 = vector.broadcast %25 : vector<8x1xf32> to vector<8x16xf32>
    %45 = arith.addf %43, %44 : vector<8x16xf32>
    %cst_15 = arith.constant 0.000000e+00 : f32
    %46 = vector.broadcast %cst_15 : f32 to vector<8x16xf32>
    %47 = arith.cmpf oge, %42, %46 : vector<8x16xf32>
    %cst_16 = arith.constant 2.000000e-01 : f32
    %48 = vector.broadcast %cst_16 : f32 to vector<8x16xf32>
    %49 = arith.mulf %48, %42 : vector<8x16xf32>
    %50 = arith.select %47, %42, %49 : vector<8x16xi1>, vector<8x16xf32>
    %cst_17 = arith.constant 0.000000e+00 : f32
    %51 = vector.broadcast %cst_17 : f32 to vector<8x16xf32>
    %52 = arith.cmpf oge, %45, %51 : vector<8x16xf32>
    %cst_18 = arith.constant 2.000000e-01 : f32
    %53 = vector.broadcast %cst_18 : f32 to vector<8x16xf32>
    %54 = arith.mulf %53, %45 : vector<8x16xf32>
    %55 = arith.select %52, %45, %54 : vector<8x16xi1>, vector<8x16xf32>
    %c0_19 = arith.constant 0 : index
    %c0_20 = arith.constant 0 : index
    %56 = vector.load %arg9[%c0_19, %c0_20] : memref<8x1xf32, #tpu.memory_space<vmem>>, vector<8x1xf32>
    %c0_21 = arith.constant 0 : index
    %c0_22 = arith.constant 0 : index
    %57 = vector.load %arg10[%c0_21, %c0_22] : memref<1x1xf32, #tpu.memory_space<vmem>>, vector<1x1xf32>
    %58 = vector.broadcast %56 : vector<8x1xf32> to vector<8x16xf32>
    %59 = arith.mulf %50, %58 : vector<8x16xf32>
    %cst_23 = arith.constant dense<0.000000e+00> : vector<16xf32>
    %60 = vector.multi_reduction <add>, %59, %cst_23 [0] : vector<8x16xf32> to vector<16xf32>
    %61 = vector.shape_cast %60 : vector<16xf32> to vector<1x16xf32>
    %62 = vector.broadcast %57 : vector<1x1xf32> to vector<1x16xf32>
    %63 = arith.addf %61, %62 : vector<1x16xf32>
    %64 = vector.broadcast %56 : vector<8x1xf32> to vector<8x16xf32>
    %65 = arith.mulf %55, %64 : vector<8x16xf32>
    %cst_24 = arith.constant dense<0.000000e+00> : vector<16xf32>
    %66 = vector.multi_reduction <add>, %65, %cst_24 [0] : vector<8x16xf32> to vector<16xf32>
    %67 = vector.shape_cast %66 : vector<16xf32> to vector<1x16xf32>
    %68 = vector.broadcast %57 : vector<1x1xf32> to vector<1x16xf32>
    %69 = arith.addf %67, %68 : vector<1x16xf32>
    %c0_25 = arith.constant 0 : index
    %c0_26 = arith.constant 0 : index
    %70 = vector.load %arg4[%c0_25, %c0_26] : memref<8x16xf32, #tpu.memory_space<vmem>>, vector<8x16xf32>
    %c0_27 = arith.constant 0 : index
    %c0_28 = arith.constant 0 : index
    %71 = vector.load %arg5[%c0_27, %c0_28] : memref<8x16xf32, #tpu.memory_space<vmem>>, vector<8x16xf32>
    %c0_29 = arith.constant 0 : index
    %c0_30 = arith.constant 0 : index
    %72 = vector.load %arg6[%c0_29, %c0_30] : memref<8x1xf32, #tpu.memory_space<vmem>>, vector<8x1xf32>
    %73 = vector.extract_strided_slice %55 {offsets = [0, 0], sizes = [8, 15], strides = [1, 1]} : vector<8x16xf32> to vector<8x15xf32>
    %74 = tpu.concatenate %21, %73 in 1 : vector<8x1xf32>, vector<8x15xf32> -> vector<8x16xf32>
    %cst_31 = arith.constant 0.000000e+00 : f32
    %75 = vector.shape_cast %18 : vector<1x16xi1> to vector<1x16xi1>
    %76 = vector.broadcast %75 : vector<1x16xi1> to vector<8x16xi1>
    %77 = vector.broadcast %cst_31 : f32 to vector<8x16xf32>
    %78 = arith.select %76, %77, %74 : vector<8x16xi1>, vector<8x16xf32>
    %79 = vector.extract_strided_slice %50 {offsets = [0, 1], sizes = [8, 15], strides = [1, 1]} : vector<8x16xf32> to vector<8x15xf32>
    %80 = tpu.concatenate %79, %21 in 1 : vector<8x15xf32>, vector<8x1xf32> -> vector<8x16xf32>
    %cst_32 = arith.constant 0.000000e+00 : f32
    %81 = vector.shape_cast %20 : vector<1x16xi1> to vector<1x16xi1>
    %82 = vector.broadcast %81 : vector<1x16xi1> to vector<8x16xi1>
    %83 = vector.broadcast %cst_32 : f32 to vector<8x16xf32>
    %84 = arith.select %82, %83, %80 : vector<8x16xi1>, vector<8x16xf32>
    %85 = tpu.concatenate %78, %50 in 0 : vector<8x16xf32>, vector<8x16xf32> -> vector<16x16xf32>
    %86 = tpu.concatenate %50, %55 in 0 : vector<8x16xf32>, vector<8x16xf32> -> vector<16x16xf32>
    %87 = tpu.concatenate %85, %86 in 1 : vector<16x16xf32>, vector<16x16xf32> -> vector<16x32xf32>
    %88 = tpu.concatenate %50, %55 in 0 : vector<8x16xf32>, vector<8x16xf32> -> vector<16x16xf32>
    %89 = tpu.concatenate %55, %84 in 0 : vector<8x16xf32>, vector<8x16xf32> -> vector<16x16xf32>
    %90 = tpu.concatenate %88, %89 in 1 : vector<16x16xf32>, vector<16x16xf32> -> vector<16x32xf32>
    %cst_33 = arith.constant dense<0.000000e+00> : vector<8x32xf32>
    %91 = tpu.matmul %70, %87, %cst_33 {dimension_numbers = #tpu.dot_dimension_numbers<[1], [0], [0], [1], [0, 0, 1, 1], [], []>} : vector<8x16xf32>, vector<16x32xf32>, vector<8x32xf32> -> vector<8x32xf32>
    %92 = vector.broadcast %72 : vector<8x1xf32> to vector<8x32xf32>
    %93 = arith.addf %91, %92 : vector<8x32xf32>
    %cst_34 = arith.constant dense<0.000000e+00> : vector<8x32xf32>
    %94 = tpu.matmul %71, %90, %cst_34 {dimension_numbers = #tpu.dot_dimension_numbers<[1], [0], [0], [1], [0, 0, 1, 1], [], []>} : vector<8x16xf32>, vector<16x32xf32>, vector<8x32xf32> -> vector<8x32xf32>
    %95 = vector.broadcast %72 : vector<8x1xf32> to vector<8x32xf32>
    %96 = arith.addf %94, %95 : vector<8x32xf32>
    %cst_35 = arith.constant 0.000000e+00 : f32
    %97 = vector.broadcast %cst_35 : f32 to vector<8x32xf32>
    %98 = arith.cmpf oge, %93, %97 : vector<8x32xf32>
    %cst_36 = arith.constant 2.000000e-01 : f32
    %99 = vector.broadcast %cst_36 : f32 to vector<8x32xf32>
    %100 = arith.mulf %99, %93 : vector<8x32xf32>
    %101 = arith.select %98, %93, %100 : vector<8x32xi1>, vector<8x32xf32>
    %cst_37 = arith.constant 0.000000e+00 : f32
    %102 = vector.broadcast %cst_37 : f32 to vector<8x32xf32>
    %103 = arith.cmpf oge, %96, %102 : vector<8x32xf32>
    %cst_38 = arith.constant 2.000000e-01 : f32
    %104 = vector.broadcast %cst_38 : f32 to vector<8x32xf32>
    %105 = arith.mulf %104, %96 : vector<8x32xf32>
    %106 = arith.select %103, %96, %105 : vector<8x32xi1>, vector<8x32xf32>
    %107 = vector.extract_strided_slice %101 {offsets = [0, 0], sizes = [8, 16], strides = [1, 1]} : vector<8x32xf32> to vector<8x16xf32>
    %108 = vector.extract_strided_slice %106 {offsets = [0, 0], sizes = [8, 16], strides = [1, 1]} : vector<8x32xf32> to vector<8x16xf32>
    %109 = vector.extract_strided_slice %101 {offsets = [0, 16], sizes = [8, 16], strides = [1, 1]} : vector<8x32xf32> to vector<8x16xf32>
    %110 = vector.extract_strided_slice %106 {offsets = [0, 16], sizes = [8, 16], strides = [1, 1]} : vector<8x32xf32> to vector<8x16xf32>
    %c0_39 = arith.constant 0 : index
    %c0_40 = arith.constant 0 : index
    %111 = vector.load %arg7[%c0_39, %c0_40] : memref<8x1xf32, #tpu.memory_space<vmem>>, vector<8x1xf32>
    %c0_41 = arith.constant 0 : index
    %c0_42 = arith.constant 0 : index
    %112 = vector.load %arg8[%c0_41, %c0_42] : memref<1x1xf32, #tpu.memory_space<vmem>>, vector<1x1xf32>
    %113 = vector.broadcast %111 : vector<8x1xf32> to vector<8x16xf32>
    %114 = arith.mulf %107, %113 : vector<8x16xf32>
    %cst_43 = arith.constant dense<0.000000e+00> : vector<16xf32>
    %115 = vector.multi_reduction <add>, %114, %cst_43 [0] : vector<8x16xf32> to vector<16xf32>
    %116 = vector.shape_cast %115 : vector<16xf32> to vector<1x16xf32>
    %117 = vector.broadcast %112 : vector<1x1xf32> to vector<1x16xf32>
    %118 = arith.addf %116, %117 : vector<1x16xf32>
    %119 = arith.addf %118, %63 : vector<1x16xf32>
    %120 = vector.broadcast %111 : vector<8x1xf32> to vector<8x16xf32>
    %121 = arith.mulf %108, %120 : vector<8x16xf32>
    %cst_44 = arith.constant dense<0.000000e+00> : vector<16xf32>
    %122 = vector.multi_reduction <add>, %121, %cst_44 [0] : vector<8x16xf32> to vector<16xf32>
    %123 = vector.shape_cast %122 : vector<16xf32> to vector<1x16xf32>
    %124 = vector.broadcast %112 : vector<1x1xf32> to vector<1x16xf32>
    %125 = arith.addf %123, %124 : vector<1x16xf32>
    %126 = arith.addf %125, %63 : vector<1x16xf32>
    %127 = vector.broadcast %111 : vector<8x1xf32> to vector<8x16xf32>
    %128 = arith.mulf %109, %127 : vector<8x16xf32>
    %cst_45 = arith.constant dense<0.000000e+00> : vector<16xf32>
    %129 = vector.multi_reduction <add>, %128, %cst_45 [0] : vector<8x16xf32> to vector<16xf32>
    %130 = vector.shape_cast %129 : vector<16xf32> to vector<1x16xf32>
    %131 = vector.broadcast %112 : vector<1x1xf32> to vector<1x16xf32>
    %132 = arith.addf %130, %131 : vector<1x16xf32>
    %133 = arith.addf %132, %69 : vector<1x16xf32>
    %134 = vector.broadcast %111 : vector<8x1xf32> to vector<8x16xf32>
    %135 = arith.mulf %110, %134 : vector<8x16xf32>
    %cst_46 = arith.constant dense<0.000000e+00> : vector<16xf32>
    %136 = vector.multi_reduction <add>, %135, %cst_46 [0] : vector<8x16xf32> to vector<16xf32>
    %137 = vector.shape_cast %136 : vector<16xf32> to vector<1x16xf32>
    %138 = vector.broadcast %112 : vector<1x1xf32> to vector<1x16xf32>
    %139 = arith.addf %137, %138 : vector<1x16xf32>
    %140 = arith.addf %139, %69 : vector<1x16xf32>
    %141 = tpu.concatenate %119, %126, %133, %140 in 0 : vector<1x16xf32>, vector<1x16xf32>, vector<1x16xf32>, vector<1x16xf32> -> vector<4x16xf32>
    %c0_47 = arith.constant 0 : index
    %c0_48 = arith.constant 0 : index
    %142 = vector.load %arg11[%c0_47, %c0_48] : memref<4x16xf32, #tpu.memory_space<vmem>>, vector<4x16xf32>
    tpu.vector_store %arg11[%c0_47, %c0_48], %141 {strides = array<i32>} : memref<4x16xf32, #tpu.memory_space<vmem>>, vector<4x16xf32>,
    return
  }
}

</mosaic_0001>

<llo_original>
// kernel: forward.1
$region0: #{forward.1}
  #allocation0 [shape = 'u32[]', space=smem, size = 0x4, offset = 0x4, fixed_abs, tag = 'smem constant byte address 0x4 - core index']
  #allocation1 [shape = 'u32[144,128]{1,0:T(1,128)}', space=vmem, size = 0x12000, scoped, tag = 'internal scratch']
  #allocation2 [shape = 'f32[1,1]{1,0:T(1,128)S(1)}', space=vmem, size = 0x200, scoped, tag = 'scoped memory for forward.1']
  #allocation3 [shape = 'f32[1,1]{1,0:T(1,128)S(1)}', space=vmem, size = 0x200, scoped, tag = 'scoped memory for forward.1']
  %s0 = inlined_call_operand.vmem [shape: f32[8,16], index: 0, kind: input, shape index: {}]
  %s1 = inlined_call_operand.vmem [shape: f32[8,16], index: 1, kind: input, shape index: {}]
  %s2 = inlined_call_operand.vmem [shape: f32[8,16], index: 2, kind: input, shape index: {}]
  %s3 = inlined_call_operand.vmem [shape: f32[8,1], index: 3, kind: input, shape index: {}]
  %s4 = inlined_call_operand.vmem [shape: f32[8,16], index: 4, kind: input, shape index: {}]
  %s5 = inlined_call_operand.vmem [shape: f32[8,16], index: 5, kind: input, shape index: {}]
  %s6 = inlined_call_operand.vmem [shape: f32[8,1], index: 6, kind: input, shape index: {}]
  %s7 = inlined_call_operand.vmem [shape: f32[8,1], index: 7, kind: input, shape index: {}]
  %s8 = inlined_call_operand.<no memory space> [shape: f32[1,1], index: 8, kind: input, shape index: {}]
  %s9 = inlined_call_operand.hbm [shape: f32[8,1], index: 9, kind: input, shape index: {}]
  %s10 = inlined_call_operand.<no memory space> [shape: f32[1,1], index: 10, kind: input, shape index: {}]
  %s11 = inlined_call_operand.vmem [shape: f32[4,16], index: 11, kind: output, shape index: {}]
  %s12 = sld [smem:[#allocation0]]
  $region58: #{forward.1} parent=0
    _
  %s14 = ssub.s32 1, %s12
  %s15 = scalar_select 0, %s14, %s12
  %v16 = vstv %s8
  %17 = vst [vmem:[#allocation2] sm:$0x1] %v16
  %v18 = vstv %s10
  %19 = vst [vmem:[#allocation3] sm:$0x1] %v18
  $region1: #{forward.1} parent=0
    #allocation4 [shape = 'u8[4096]{0}', space=vmem, size = 0x1000, scoped, tag = 'input window, operand 9, single buffered']
    #allocation5 [shape = 's32[1]{0}', space=sflag, size = 0x4, scoped, tag = 'scoped memory for forward.1']
    %20 = vsyncpa [#allocation5], 0
    // Predicated region
    $region2: #{forward.1} parent=1 // pred_check
      _
    $region3: #{forward.1} parent=1 // pred_check_branch
      %22 = sbr.rel (0) target = $region5
    $region4: #{forward.1} parent=1 // pred_region
      _
    $region5: #{forward.1} parent=1 // pred_fallthru
      _
    // Predicated region
    $region6: #{forward.1} parent=1 // pred_check
      _
    $region7: #{forward.1} parent=1 // pred_check_branch
      %24 = sbr.rel (0) target = $region9
    $region8: #{forward.1} parent=1 // pred_region
      _
    $region9: #{forward.1} parent=1 // pred_fallthru
      _
    // Predicated region
    $region10: #{forward.1} parent=1 // pred_check
      _
    $region11: #{forward.1} parent=1 // pred_check_branch
      %26 = sbr.rel (0) target = $region13
    $region12: #{forward.1} parent=1 // pred_region
      _
    $region13: #{forward.1} parent=1 // pred_fallthru
      _
    // Predicated region
    $region14: #{forward.1} parent=1 // pred_check
      _
    $region15: #{forward.1} parent=1 // pred_check_branch
      %28 = sbr.rel (0) target = $region17
    $region16: #{forward.1} parent=1 // pred_region
      _
    $region17: #{forward.1} parent=1 // pred_fallthru
      _
    // Predicated region
    $region18: #{forward.1} parent=1 // pred_check
      _
    $region19: #{forward.1} parent=1 // pred_check_branch
      %30 = sbr.rel (0) target = $region21
    $region20: #{forward.1} parent=1 // pred_region
      _
    $region21: #{forward.1} parent=1 // pred_fallthru
      _
    // Predicated region
    $region22: #{forward.1} parent=1 // pred_check
      _
    $region23: #{forward.1} parent=1 // pred_check_branch
      %32 = sbr.rel (0) target = $region25
    $region24: #{forward.1} parent=1 // pred_region
      _
    $region25: #{forward.1} parent=1 // pred_fallthru
      _
    // Predicated region
    $region26: #{forward.1} parent=1 // pred_check
      _
    $region27: #{forward.1} parent=1 // pred_check_branch
      %34 = sbr.rel (0) target = $region29
    $region28: #{forward.1} parent=1 // pred_region
      _
    $region29: #{forward.1} parent=1 // pred_fallthru
      _
    // Predicated region
    $region30: #{forward.1} parent=1 // pred_check
      _
    $region31: #{forward.1} parent=1 // pred_check_branch
      %36 = sbr.rel (0) target = $region33
    $region32: #{forward.1} parent=1 // pred_region
      _
    $region33: #{forward.1} parent=1 // pred_fallthru
      _
    // Predicated region
    $region34: #{forward.1} parent=1 // pred_check
      _
    $region35: #{forward.1} parent=1 // pred_check_branch
      %38 = sbr.rel (0) target = $region37
    $region36: #{forward.1} parent=1 // pred_region
      _
    $region37: #{forward.1} parent=1 // pred_fallthru
      _
    // Predicated region
    $region38: #{forward.1} parent=1 // pred_check
      _
    $region39: #{forward.1} parent=1 // pred_check_branch
      %40 = sbr.rel (0) target = $region41
    $region40: #{forward.1} parent=1 // pred_region
      %s42 = ssub.s32 128, 128
      %43 = vsyncadd [#allocation5], %s42
      %s45 = sshll.u32 [#allocation4], 4
      %s46 = int_to_ptr.vmem [resolvable:$true] %s45
      %48 = dma.hbm_to_vmem [thread:$0]  %s9, 128, %s46, [#allocation5]
    $region41: #{forward.1} parent=1 // pred_fallthru
      _
    // Predicated region
    $region42: #{forward.1} parent=1 // pred_check
      _
    $region43: #{forward.1} parent=1 // pred_check_branch
      %50 = sbr.rel (0) target = $region45
    $region44: #{forward.1} parent=1 // pred_region
      _
    $region45: #{forward.1} parent=1 // pred_fallthru
      _
    // Predicated region
    $region46: #{forward.1} parent=1 // pred_check
      _
    $region47: #{forward.1} parent=1 // pred_check_branch
      %52 = sbr.rel (0) target = $region49
    $region48: #{forward.1} parent=1 // pred_region
      %53 = dma.done [#allocation5], 128
    $region49: #{forward.1} parent=1 // pred_fallthru
      _
    %v54 = vlaneseq
    %v55 = vand.u32 %v54, 127
    %vm56 = vcmp.lt.s32.totalorder %v55, 0
    %v57 = vsub.s32 0, %v55
    %v58 = vsel %vm56, %v57, %v55
    %v59 = vshrl.u32 %v58, 3
    %v60 = vand.u32 %v58, 7
    %v61 = vsub.s32 0, %v60
    %v62 = vsel %vm56, %v61, %v60
    %vm63 = vcmp.ne.s32.totalorder %v62, 0
    %vm64 = vcmp.lt.s32.totalorder %v62, 0
    %vm65 = vmand %vm64, %vm63
    %v66 = vadd.s32 %v62, 8
    %v67 = vsel %vm65, %v66, %v62
    %vm68 = vcmp.eq.s32.totalorder %v67, 0
    %vm69 = vcmp.eq.s32.totalorder %v67, 7
    %v70 = vld [vmem:[%s0] sm:$0xff]
    %v71 = vld [vmem:[%s1] sm:$0xff]
    %v72 = vld [vmem:[%s2] sm:$0xff]
    %v73 = vld [vmem:[%s3] sm:$0xff]
    %75 = vrot.lane.b32.xlu0 %v70, 1
    %v76 = vpop.permute.xlu0 %75
    %vm78 = vcmask 7168
    %v79 = vsel %vm78, 0.0, %v76
    %v80 = vsel %vm68, 1, 0
    %vm81 = vcmp.eq.s32.totalorder %v80, 1
    %v82 = vsel %vm81, 0.0, %v79
    %83 = vrot.lane.b32.xlu0 %v70, 127
    %v84 = vpop.permute.xlu0 %83
    %vm86 = vcmask 121856
    %v87 = vsel %vm86, %v84, 0.0
    %v88 = vsel %vm69, 1, 0
    %vm89 = vcmp.eq.s32.totalorder %v88, 1
    %v90 = vsel %vm89, 0.0, %v87
    %92 = vset.pattern.permute.xlu0 0
    %93 = vperm.xlu0 %92, %v73
    %v94 = vpop.permute.xlu0 %93
    %vm96 = vcmask 130048
    %v98 = vsel %vm96, %v71, 0
    %100 = vmatprep.subr.mxu0 0.0
    %101 = vmatpush1.msra.mxu0 0.0
    %102 = vmatprep.subr.mxu0 0.0
    %103 = vmatpush1.msra.mxu0 0.0
    %104 = vmatprep.subr.mxu0 0.0
    %105 = vmatpush1.msra.mxu0 0.0
    %106 = vmatprep.subr.mxu0 0.0
    %107 = vmatpush1.msra.mxu0 0.0
    %108 = vmatprep.subr.mxu0 0.0
    %109 = vmatpush1.msra.mxu0 0.0
    %110 = vmatprep.subr.mxu0 0.0
    %111 = vmatpush1.msra.mxu0 0.0
    %112 = vmatprep.subr.mxu0 0.0
    %113 = vmatpush1.msra.mxu0 0.0
    %114 = vmatprep.subr.mxu0 0.0
    %115 = vmatpush1.msra.mxu0 0.0
    %116 = vmatprep.subr.mxu0 0.0
    %117 = vmatpush1.msra.mxu0 0.0
    %118 = vmatprep.subr.mxu0 0.0
    %119 = vmatpush1.msra.mxu0 0.0
    %120 = vmatprep.subr.mxu0 0.0
    %121 = vmatpush1.msra.mxu0 0.0
    %122 = vmatprep.subr.mxu0 0.0
    %123 = vmatpush1.msra.mxu0 0.0
    %124 = vmatprep.subr.mxu0 0.0
    %125 = vmatpush1.msra.mxu0 0.0
    %126 = vmatprep.subr.mxu0 0.0
    %127 = vmatpush1.msra.mxu0 0.0
    %128 = vmatprep.subr.mxu0 0.0
    %129 = vmatpush1.msra.mxu0 %v70
    %130 = vmatprep.subr.mxu0 0.0
    %131 = vmatpush1.msra.mxu0 %v82
    %132 = vmatprep.subr.mxu0 0.0
    %133 = vmatpush2.msra.mxu0 0.0
    %134 = vmatprep.subr.mxu0 0.0
    %135 = vmatpush2.msra.mxu0 0.0
    %136 = vmatprep.subr.mxu0 0.0
    %137 = vmatpush2.msra.mxu0 0.0
    %138 = vmatprep.subr.mxu0 0.0
    %139 = vmatpush2.msra.mxu0 0.0
    %140 = vmatprep.subr.mxu0 0.0
    %141 = vmatpush2.msra.mxu0 0.0
    %142 = vmatprep.subr.mxu0 0.0
    %143 = vmatpush2.msra.mxu0 0.0
    %144 = vmatprep.subr.mxu0 0.0
    %145 = vmatpush2.msra.mxu0 0.0
    %146 = vmatprep.subr.mxu0 0.0
    %147 = vmatpush2.msra.mxu0 0.0
    %148 = vmatprep.subr.mxu0 0.0
    %149 = vmatpush2.msra.mxu0 0.0
    %150 = vmatprep.subr.mxu0 0.0
    %151 = vmatpush2.msra.mxu0 0.0
    %152 = vmatprep.subr.mxu0 0.0
    %153 = vmatpush2.msra.mxu0 0.0
    %154 = vmatprep.subr.mxu0 0.0
    %155 = vmatpush2.msra.mxu0 0.0
    %156 = vmatprep.subr.mxu0 0.0
    %157 = vmatpush2.msra.mxu0 0.0
    %158 = vmatprep.subr.mxu0 0.0
    %159 = vmatpush2.msra.mxu0 0.0
    %160 = vmatprep.subr.mxu0 0.0
    %161 = vmatpush2.msra.mxu0 0.0
    %162 = vmatprep.subr.mxu0 0.0
    %163 = vmatpush2.msra.mxu0 0.0
    %164 = vmatprep.mubr.f32.mxu0 0.0
    %165 = vmatmul.mubr.f32.gmra.mxu0 %v98
    %v166 = vpop.f32.mrf.mxu0
    %v167 = vadd.f32 %v94, %v166
    %v168 = vpop.f32.mrf.mxu0
    %169 = vdwg.mxu0
    %v171 = vsel %vm96, %v72, 0
    %173 = vmatprep.subr.mxu0 0.0
    %174 = vmatpush1.msra.mxu0 0.0
    %175 = vmatprep.subr.mxu0 0.0
    %176 = vmatpush1.msra.mxu0 0.0
    %177 = vmatprep.subr.mxu0 0.0
    %178 = vmatpush1.msra.mxu0 0.0
    %179 = vmatprep.subr.mxu0 0.0
    %180 = vmatpush1.msra.mxu0 0.0
    %181 = vmatprep.subr.mxu0 0.0
    %182 = vmatpush1.msra.mxu0 0.0
    %183 = vmatprep.subr.mxu0 0.0
    %184 = vmatpush1.msra.mxu0 0.0
    %185 = vmatprep.subr.mxu0 0.0
    %186 = vmatpush1.msra.mxu0 0.0
    %187 = vmatprep.subr.mxu0 0.0
    %188 = vmatpush1.msra.mxu0 0.0
    %189 = vmatprep.subr.mxu0 0.0
    %190 = vmatpush1.msra.mxu0 0.0
    %191 = vmatprep.subr.mxu0 0.0
    %192 = vmatpush1.msra.mxu0 0.0
    %193 = vmatprep.subr.mxu0 0.0
    %194 = vmatpush1.msra.mxu0 0.0
    %195 = vmatprep.subr.mxu0 0.0
    %196 = vmatpush1.msra.mxu0 0.0
    %197 = vmatprep.subr.mxu0 0.0
    %198 = vmatpush1.msra.mxu0 0.0
    %199 = vmatprep.subr.mxu0 0.0
    %200 = vmatpush1.msra.mxu0 0.0
    %201 = vmatprep.subr.mxu0 0.0
    %202 = vmatpush1.msra.mxu0 %v90
    %203 = vmatprep.subr.mxu0 0.0
    %204 = vmatpush1.msra.mxu0 %v70
    %205 = vmatprep.subr.mxu0 0.0
    %206 = vmatpush2.msra.mxu0 0.0
    %207 = vmatprep.subr.mxu0 0.0
    %208 = vmatpush2.msra.mxu0 0.0
    %209 = vmatprep.subr.mxu0 0.0
    %210 = vmatpush2.msra.mxu0 0.0
    %211 = vmatprep.subr.mxu0 0.0
    %212 = vmatpush2.msra.mxu0 0.0
    %213 = vmatprep.subr.mxu0 0.0
    %214 = vmatpush2.msra.mxu0 0.0
    %215 = vmatprep.subr.mxu0 0.0
    %216 = vmatpush2.msra.mxu0 0.0
    %217 = vmatprep.subr.mxu0 0.0
    %218 = vmatpush2.msra.mxu0 0.0
    %219 = vmatprep.subr.mxu0 0.0
    %220 = vmatpush2.msra.mxu0 0.0
    %221 = vmatprep.subr.mxu0 0.0
    %222 = vmatpush2.msra.mxu0 0.0
    %223 = vmatprep.subr.mxu0 0.0
    %224 = vmatpush2.msra.mxu0 0.0
    %225 = vmatprep.subr.mxu0 0.0
    %226 = vmatpush2.msra.mxu0 0.0
    %227 = vmatprep.subr.mxu0 0.0
    %228 = vmatpush2.msra.mxu0 0.0
    %229 = vmatprep.subr.mxu0 0.0
    %230 = vmatpush2.msra.mxu0 0.0
    %231 = vmatprep.subr.mxu0 0.0
    %232 = vmatpush2.msra.mxu0 0.0
    %233 = vmatprep.subr.mxu0 0.0
    %234 = vmatpush2.msra.mxu0 0.0
    %235 = vmatprep.subr.mxu0 0.0
    %236 = vmatpush2.msra.mxu0 0.0
    %237 = vmatprep.mubr.f32.mxu0 0.0
    %238 = vmatmul.mubr.f32.gmra.mxu0 %v171
    %v239 = vpop.f32.mrf.mxu0
    %v240 = vadd.f32 %v94, %v239
    %v241 = vpop.f32.mrf.mxu0
    %242 = vdwg.mxu0
    %vm243 = vcmp.ge.f32.partialorder %v167, 0.0
    %v244 = vmul.f32 %v167, 0.2
    %v245 = vsel %vm243, %v167, %v244
    %vm246 = vcmp.ge.f32.partialorder %v240, 0.0
    %v247 = vmul.f32 %v240, 0.2
    %v248 = vsel %vm246, %v240, %v247
    %v249 = vld [vmem:[#allocation4] sm:$0xff]
    %v250 = vld [vmem:[#allocation3] sm:$0x1]
    %252 = vset.pattern.permute.xlu0 0
    %253 = vperm.xlu0 %252, %v249
    %v254 = vpop.permute.xlu0 %253
    %v256 = vmul.f32 %v245, %v254
    %v257 = vsel %vm96, %v256, 0.0
    %v258 = vrot.slane %v257, 4
    %v259 = vadd.f32 %v257, %v258
    %v260 = vrot.slane %v259, 2
    %v261 = vadd.f32 %v259, %v260
    %v262 = vrot.slane %v261, 1
    %v263 = vadd.f32 %v261, %v262
    %265 = vset.pattern.permute.xlu0 0
    %266 = vperm.xlu0 %265, %v250
    %v267 = vpop.permute.xlu0 %266
    %v269 = vlaneseq
    %v270 = vshrl.u32 %v269, 7
    %v271 = vsub.s32 0, %v270
    %v272 = vrot.slane %v267, %v271
    %v273 = vadd.f32 %v263, %v272
    %v274 = vmul.f32 %v248, %v254
    %v275 = vsel %vm96, %v274, 0.0
    %v276 = vrot.slane %v275, 4
    %v277 = vadd.f32 %v275, %v276
    %v278 = vrot.slane %v277, 2
    %v279 = vadd.f32 %v277, %v278
    %v280 = vrot.slane %v279, 1
    %v281 = vadd.f32 %v279, %v280
    %v282 = vadd.f32 %v281, %v272
    %v283 = vld [vmem:[%s4] sm:$0xff]
    %v284 = vld [vmem:[%s5] sm:$0xff]
    %v285 = vld [vmem:[%s6] sm:$0xff]
    %287 = vrot.lane.b32.xlu0 %v248, 1
    %v288 = vpop.permute.xlu0 %287
    %v290 = vsel %vm78, 0.0, %v288
    %v291 = vsel %vm81, 0.0, %v290
    %293 = vrot.lane.b32.xlu0 %v245, 127
    %v294 = vpop.permute.xlu0 %293
    %v296 = vsel %vm86, %v294, 0.0
    %v297 = vsel %vm89, 0.0, %v296
    %298 = vrot.lane.b32.xlu0 %v245, 16
    %v299 = vpop.permute.xlu0 %298
    %300 = vrot.lane.b32.xlu0 %v248, 16
    %v301 = vpop.permute.xlu0 %300
    %v304 = vsel %vm96, %v291, %v299
    %v305 = vsel %vm96, %v245, %v301
    %307 = vrot.lane.b32.xlu0 %v297, 16
    %v308 = vpop.permute.xlu0 %307
    %v310 = vsel %vm96, %v248, %v308
    %312 = vset.pattern.permute.xlu0 0
    %313 = vperm.xlu0 %312, %v285
    %v314 = vpop.permute.xlu0 %313
    %v317 = vsel %vm96, %v283, 0
    %319 = vmatprep.subr.mxu0 0.0
    %320 = vmatpush1.msra.mxu0 0.0
    %321 = vmatprep.subr.mxu0 0.0
    %322 = vmatpush1.msra.mxu0 0.0
    %323 = vmatprep.subr.mxu0 0.0
    %324 = vmatpush1.msra.mxu0 0.0
    %325 = vmatprep.subr.mxu0 0.0
    %326 = vmatpush1.msra.mxu0 0.0
    %327 = vmatprep.subr.mxu0 0.0
    %328 = vmatpush1.msra.mxu0 0.0
    %329 = vmatprep.subr.mxu0 0.0
    %330 = vmatpush1.msra.mxu0 0.0
    %331 = vmatprep.subr.mxu0 0.0
    %332 = vmatpush1.msra.mxu0 0.0
    %333 = vmatprep.subr.mxu0 0.0
    %334 = vmatpush1.msra.mxu0 0.0
    %335 = vmatprep.subr.mxu0 0.0
    %336 = vmatpush1.msra.mxu0 0.0
    %337 = vmatprep.subr.mxu0 0.0
    %338 = vmatpush1.msra.mxu0 0.0
    %339 = vmatprep.subr.mxu0 0.0
    %340 = vmatpush1.msra.mxu0 0.0
    %341 = vmatprep.subr.mxu0 0.0
    %342 = vmatpush1.msra.mxu0 0.0
    %343 = vmatprep.subr.mxu0 0.0
    %344 = vmatpush1.msra.mxu0 0.0
    %345 = vmatprep.subr.mxu0 0.0
    %346 = vmatpush1.msra.mxu0 0.0
    %347 = vmatprep.subr.mxu0 0.0
    %348 = vmatpush1.msra.mxu0 %v305
    %349 = vmatprep.subr.mxu0 0.0
    %350 = vmatpush1.msra.mxu0 %v304
    %351 = vmatprep.subr.mxu0 0.0
    %352 = vmatpush2.msra.mxu0 0.0
    %353 = vmatprep.subr.mxu0 0.0
    %354 = vmatpush2.msra.mxu0 0.0
    %355 = vmatprep.subr.mxu0 0.0
    %356 = vmatpush2.msra.mxu0 0.0
    %357 = vmatprep.subr.mxu0 0.0
    %358 = vmatpush2.msra.mxu0 0.0
    %359 = vmatprep.subr.mxu0 0.0
    %360 = vmatpush2.msra.mxu0 0.0
    %361 = vmatprep.subr.mxu0 0.0
    %362 = vmatpush2.msra.mxu0 0.0
    %363 = vmatprep.subr.mxu0 0.0
    %364 = vmatpush2.msra.mxu0 0.0
    %365 = vmatprep.subr.mxu0 0.0
    %366 = vmatpush2.msra.mxu0 0.0
    %367 = vmatprep.subr.mxu0 0.0
    %368 = vmatpush2.msra.mxu0 0.0
    %369 = vmatprep.subr.mxu0 0.0
    %370 = vmatpush2.msra.mxu0 0.0
    %371 = vmatprep.subr.mxu0 0.0
    %372 = vmatpush2.msra.mxu0 0.0
    %373 = vmatprep.subr.mxu0 0.0
    %374 = vmatpush2.msra.mxu0 0.0
    %375 = vmatprep.subr.mxu0 0.0
    %376 = vmatpush2.msra.mxu0 0.0
    %377 = vmatprep.subr.mxu0 0.0
    %378 = vmatpush2.msra.mxu0 0.0
    %379 = vmatprep.subr.mxu0 0.0
    %380 = vmatpush2.msra.mxu0 0.0
    %381 = vmatprep.subr.mxu0 0.0
    %382 = vmatpush2.msra.mxu0 0.0
    %383 = vmatprep.mubr.f32.mxu0 0.0
    %384 = vmatmul.mubr.f32.gmra.mxu0 %v317
    %v385 = vpop.f32.mrf.mxu0
    %v386 = vadd.f32 %v314, %v385
    %v387 = vpop.f32.mrf.mxu0
    %388 = vdwg.mxu0
    %v390 = vsel %vm96, %v284, 0
    %392 = vmatprep.subr.mxu0 0.0
    %393 = vmatpush1.msra.mxu0 0.0
    %394 = vmatprep.subr.mxu0 0.0
    %395 = vmatpush1.msra.mxu0 0.0
    %396 = vmatprep.subr.mxu0 0.0
    %397 = vmatpush1.msra.mxu0 0.0
    %398 = vmatprep.subr.mxu0 0.0
    %399 = vmatpush1.msra.mxu0 0.0
    %400 = vmatprep.subr.mxu0 0.0
    %401 = vmatpush1.msra.mxu0 0.0
    %402 = vmatprep.subr.mxu0 0.0
    %403 = vmatpush1.msra.mxu0 0.0
    %404 = vmatprep.subr.mxu0 0.0
    %405 = vmatpush1.msra.mxu0 0.0
    %406 = vmatprep.subr.mxu0 0.0
    %407 = vmatpush1.msra.mxu0 0.0
    %408 = vmatprep.subr.mxu0 0.0
    %409 = vmatpush1.msra.mxu0 0.0
    %410 = vmatprep.subr.mxu0 0.0
    %411 = vmatpush1.msra.mxu0 0.0
    %412 = vmatprep.subr.mxu0 0.0
    %413 = vmatpush1.msra.mxu0 0.0
    %414 = vmatprep.subr.mxu0 0.0
    %415 = vmatpush1.msra.mxu0 0.0
    %416 = vmatprep.subr.mxu0 0.0
    %417 = vmatpush1.msra.mxu0 0.0
    %418 = vmatprep.subr.mxu0 0.0
    %419 = vmatpush1.msra.mxu0 0.0
    %420 = vmatprep.subr.mxu0 0.0
    %421 = vmatpush1.msra.mxu0 %v310
    %422 = vmatprep.subr.mxu0 0.0
    %423 = vmatpush1.msra.mxu0 %v305
    %424 = vmatprep.subr.mxu0 0.0
    %425 = vmatpush2.msra.mxu0 0.0
    %426 = vmatprep.subr.mxu0 0.0
    %427 = vmatpush2.msra.mxu0 0.0
    %428 = vmatprep.subr.mxu0 0.0
    %429 = vmatpush2.msra.mxu0 0.0
    %430 = vmatprep.subr.mxu0 0.0
    %431 = vmatpush2.msra.mxu0 0.0
    %432 = vmatprep.subr.mxu0 0.0
    %433 = vmatpush2.msra.mxu0 0.0
    %434 = vmatprep.subr.mxu0 0.0
    %435 = vmatpush2.msra.mxu0 0.0
    %436 = vmatprep.subr.mxu0 0.0
    %437 = vmatpush2.msra.mxu0 0.0
    %438 = vmatprep.subr.mxu0 0.0
    %439 = vmatpush2.msra.mxu0 0.0
    %440 = vmatprep.subr.mxu0 0.0
    %441 = vmatpush2.msra.mxu0 0.0
    %442 = vmatprep.subr.mxu0 0.0
    %443 = vmatpush2.msra.mxu0 0.0
    %444 = vmatprep.subr.mxu0 0.0
    %445 = vmatpush2.msra.mxu0 0.0
    %446 = vmatprep.subr.mxu0 0.0
    %447 = vmatpush2.msra.mxu0 0.0
    %448 = vmatprep.subr.mxu0 0.0
    %449 = vmatpush2.msra.mxu0 0.0
    %450 = vmatprep.subr.mxu0 0.0
    %451 = vmatpush2.msra.mxu0 0.0
    %452 = vmatprep.subr.mxu0 0.0
    %453 = vmatpush2.msra.mxu0 0.0
    %454 = vmatprep.subr.mxu0 0.0
    %455 = vmatpush2.msra.mxu0 0.0
    %456 = vmatprep.mubr.f32.mxu0 0.0
    %457 = vmatmul.mubr.f32.gmra.mxu0 %v390
    %v458 = vpop.f32.mrf.mxu0
    %v459 = vadd.f32 %v314, %v458
    %v460 = vpop.f32.mrf.mxu0
    %461 = vdwg.mxu0
    %vm462 = vcmp.ge.f32.partialorder %v386, 0.0
    %v463 = vmul.f32 %v386, 0.2
    %v464 = vsel %vm462, %v386, %v463
    %vm465 = vcmp.ge.f32.partialorder %v459, 0.0
    %v466 = vmul.f32 %v459, 0.2
    %v467 = vsel %vm465, %v459, %v466
    %v468 = vld [vmem:[%s7] sm:$0xff]
    %v469 = vld [vmem:[#allocation2] sm:$0x1]
    %471 = vset.pattern.permute.xlu0 0
    %472 = vperm.xlu0 %471, %v468
    %v473 = vpop.permute.xlu0 %472
    %v475 = vmul.f32 %v464, %v473
    %v476 = vsel %vm96, %v475, 0.0
    %v477 = vrot.slane %v476, 4
    %v478 = vadd.f32 %v476, %v477
    %v479 = vrot.slane %v478, 2
    %v480 = vadd.f32 %v478, %v479
    %v481 = vrot.slane %v480, 1
    %v482 = vadd.f32 %v480, %v481
    %484 = vset.pattern.permute.xlu0 0
    %485 = vperm.xlu0 %484, %v469
    %v486 = vpop.permute.xlu0 %485
    %v488 = vlaneseq
    %v489 = vshrl.u32 %v488, 7
    %v490 = vsub.s32 0, %v489
    %v491 = vrot.slane %v486, %v490
    %v492 = vadd.f32 %v482, %v491
    %v493 = vadd.f32 %v492, %v273
    %v494 = vmul.f32 %v467, %v473
    %v495 = vsel %vm96, %v494, 0.0
    %v496 = vrot.slane %v495, 4
    %v497 = vadd.f32 %v495, %v496
    %v498 = vrot.slane %v497, 2
    %v499 = vadd.f32 %v497, %v498
    %v500 = vrot.slane %v499, 1
    %v501 = vadd.f32 %v499, %v500
    %v502 = vadd.f32 %v501, %v491
    %v503 = vadd.f32 %v502, %v273
    %vm504 = vcmask 261248
    %v505 = vsel %vm504, %v475, 0.0
    %v506 = vrot.slane %v505, 4
    %v507 = vadd.f32 %v505, %v506
    %v508 = vrot.slane %v507, 2
    %v509 = vadd.f32 %v507, %v508
    %v510 = vrot.slane %v509, 1
    %v511 = vadd.f32 %v509, %v510
    %v512 = vadd.f32 %v511, %v491
    %514 = vrot.lane.b32.xlu0 %v282, 16
    %v515 = vpop.permute.xlu0 %514
    %v517 = vadd.f32 %v512, %v515
    %v518 = vsel %vm504, %v494, 0.0
    %v519 = vrot.slane %v518, 4
    %v520 = vadd.f32 %v518, %v519
    %v521 = vrot.slane %v520, 2
    %v522 = vadd.f32 %v520, %v521
    %v523 = vrot.slane %v522, 1
    %v524 = vadd.f32 %v522, %v523
    %v525 = vadd.f32 %v524, %v491
    %v526 = vadd.f32 %v525, %v515
    %v528 = vrot.slane %v517, 6
    %529 = vrot.lane.b32.xlu0 %v528, 112
    %v530 = vpop.permute.xlu0 %529
    %v533 = vrot.slane %v526, 5
    %534 = vrot.lane.b32.xlu0 %v533, 112
    %v535 = vpop.permute.xlu0 %534
    %vm537 = vcmask 1040384
    %v538 = vsel %vm537, %v493, %v503
    %vm539 = vcmask 1041408
    %v540 = vsel %vm539, %v538, %v530
    %vm541 = vcmask 1042432
    %v542 = vsel %vm541, %v540, %v535
    %vm543 = vcmask 125952
    %544 = vst.msk [vmem:[%s11] sm:$0xf] %vm543, %v542
    // Predicated region
    $region50: #{forward.1} parent=1 // pred_check
      _
    $region51: #{forward.1} parent=1 // pred_check_branch
      %546 = sbr.rel (0) target = $region53
    $region52: #{forward.1} parent=1 // pred_region
      _
    $region53: #{forward.1} parent=1 // pred_fallthru
      _
    // Predicated region
    $region54: #{forward.1} parent=1 // pred_check
      _
    $region55: #{forward.1} parent=1 // pred_check_branch
      %548 = sbr.rel (0) target = $region57
    $region56: #{forward.1} parent=1 // pred_region
      _
    $region57: #{forward.1} parent=1 // pred_fallthru
      _
    %549 = vsyncpa [#allocation5], 1

</llo_original>
